<compile_context>
chip_gen: v7x
topology: tpu7x:2x2x1
jax: 0.10.0
libtpu: 0.0.40
codegen_flags: <defaults>
</compile_context>

<pallas_src>
import functools

import jax
import jax.numpy as jnp
from jax.experimental import pallas as pl
from jax.experimental.pallas import tpu as pltpu


# ---------------------------------------------------------------------------
# Shared in-kernel LSTM cell math (f32 throughout).
# ---------------------------------------------------------------------------
def _lstm_step(x, h, c, wx, wh, b, hidden_dim, padded_hidden):
    """One LSTM cell update on VMEM-resident values.

    wx: (input_dim, 4*Hp), wh: (H, 4*Hp), b: (1, 4*Hp) with each gate block
    padded to Hp = round_up(H, 128) lanes so the per-gate slices below start
    on vreg boundaries.
    """
    gates = (jnp.dot(x, wx, preferred_element_type=jnp.float32)
             + jnp.dot(h, wh, preferred_element_type=jnp.float32)
             + b)
    hp = padded_hidden
    i_lin = gates[:, 0 * hp: 0 * hp + hidden_dim]
    f_lin = gates[:, 1 * hp: 1 * hp + hidden_dim]
    g_lin = gates[:, 2 * hp: 2 * hp + hidden_dim]
    o_lin = gates[:, 3 * hp: 3 * hp + hidden_dim]

    c_new = (jax.nn.sigmoid(f_lin) * c
             + jax.nn.sigmoid(i_lin) * jnp.tanh(g_lin))
    h_new = jax.nn.sigmoid(o_lin) * jnp.tanh(c_new)
    return h_new, c_new


# ---------------------------------------------------------------------------
# Kernel 1: single LSTMCell step (matches Decoder.forward exactly).
# ---------------------------------------------------------------------------
def _lstm_cell_kernel(x_ref, h_ref, c_ref, wx_ref, wh_ref, b_ref,
                      h_out_ref, c_out_ref, *, hidden_dim, padded_hidden):
    h_new, c_new = _lstm_step(
        x_ref[...].astype(jnp.float32),
        h_ref[...].astype(jnp.float32),
        c_ref[...].astype(jnp.float32),
        wx_ref[...], wh_ref[...], b_ref[...],
        hidden_dim, padded_hidden)
    h_out_ref[...] = h_new.astype(h_out_ref.dtype)
    c_out_ref[...] = c_new.astype(c_out_ref.dtype)


# ---------------------------------------------------------------------------
# Kernel 2: T timesteps inside one pallas_call (grid over T, "arbitrary").
# Weights stay VMEM-resident; h/c carried in f32 VMEM scratch.
# ---------------------------------------------------------------------------
def _lstm_seq_kernel(x_ref, h0_ref, c0_ref, wx_ref, wh_ref, b_ref,
                     h_seq_ref, c_out_ref, h_scr, c_scr,
                     *, hidden_dim, padded_hidden):
    t = pl.program_id(0)

    @pl.when(t == 0)
    def _():
        h_scr[...] = h0_ref[...].astype(jnp.float32)
        c_scr[...] = c0_ref[...].astype(jnp.float32)

    x_t = x_ref[0]                      # (B, input_dim) for this timestep
    h_new, c_new = _lstm_step(
        x_t.astype(jnp.float32), h_scr[...], c_scr[...],
        wx_ref[...], wh_ref[...], b_ref[...],
        hidden_dim, padded_hidden)

    h_scr[...] = h_new
    c_scr[...] = c_new

    h_seq_ref[0] = h_new.astype(h_seq_ref.dtype)   # per-step h output
    c_out_ref[...] = c_new                         # VMEM-resident final-c block


# ---------------------------------------------------------------------------
# One-time parameter preparation (load/init time, NOT per forward call).
# ---------------------------------------------------------------------------
def _round_up(x, m):
    return ((x + m - 1) // m) * m


def _pad_gate_cols(mat, hidden, padded_hidden):
    """(K, 4H) -> (K, 4*Hp): each gate block starts at a 128-lane boundary."""
    blocks = jnp.split(mat, 4, axis=1)
    padded = [jnp.pad(b, ((0, 0), (0, padded_hidden - hidden))) for b in blocks]
    return jnp.concatenate(padded, axis=1)


def prepare_decoder_params(params, lane=128):
    """Transpose/split weights, fold biases, pad each gate to a vreg boundary."""
    w_ih = params["w_ih"].astype(jnp.float32)    # (4H, input_dim)
    w_hh = params["w_hh"].astype(jnp.float32)    # (4H, H)
    b = (params["b_ih"] + params["b_hh"]).astype(jnp.float32)  # (4H,)

    four_h = w_ih.shape[0]
    hidden = four_h // 4
    hp = _round_up(hidden, lane)

    w_x = _pad_gate_cols(w_ih.T, hidden, hp)               # (input_dim, 4*Hp)
    w_h = _pad_gate_cols(w_hh.T, hidden, hp)                # (H, 4*Hp)
    bias = _pad_gate_cols(b.reshape(1, four_h), hidden, hp)  # (1, 4*Hp)

    return {
        "w_x": w_x,
        "w_h": w_h,
        "bias": bias,
        "hidden_dim": int(hidden),
        "padded_hidden": int(hp),
    }


# ---------------------------------------------------------------------------
# Wrappers.
# ---------------------------------------------------------------------------
def decoder_forward(latent_sample, prev_h_dec, prev_c_dec, prepared):
    """One LSTMCell step: returns (h_dec_curr, c_dec_curr)."""
    w_x, w_h, bias = prepared["w_x"], prepared["w_h"], prepared["bias"]
    hidden = prepared["hidden_dim"]
    hp = prepared["padded_hidden"]

    batch, input_dim = latent_sample.shape
    kernel = functools.partial(_lstm_cell_kernel,
                               hidden_dim=hidden, padded_hidden=hp)

    full = lambda shape: pl.BlockSpec(shape, lambda: (0,) * len(shape))

    h_new, c_new = pl.pallas_call(
        kernel,
        out_shape=(
            jax.ShapeDtypeStruct((batch, hidden), latent_sample.dtype),
            jax.ShapeDtypeStruct((batch, hidden), jnp.float32),  # c pinned f32
        ),
        in_specs=[
            full((batch, input_dim)),    # x
            full((batch, hidden)),       # h_prev
            full((batch, hidden)),       # c_prev
            full(w_x.shape),             # (input_dim, 4*Hp)
            full(w_h.shape),             # (H, 4*Hp)
            full(bias.shape),            # (1, 4*Hp)
        ],
        out_specs=(
            full((batch, hidden)),
            full((batch, hidden)),
        ),
    )(latent_sample, prev_h_dec, prev_c_dec, w_x, w_h, bias)
    return h_new, c_new


def decoder_decode_sequence(latent_seq, h0, c0, prepared):
    """Decode T steps inside ONE pallas_call.

    latent_seq: (T, B, input_dim). Returns (h_seq (T,B,H), h_T (B,H), c_T (B,H)).
    """
    w_x, w_h, bias = prepared["w_x"], prepared["w_h"], prepared["bias"]
    hidden = prepared["hidden_dim"]
    hp = prepared["padded_hidden"]
    seq_len, batch, input_dim = latent_seq.shape

    kernel = functools.partial(_lstm_seq_kernel,
                               hidden_dim=hidden, padded_hidden=hp)

    h_seq, c_final = pl.pallas_call(
        kernel,
        out_shape=(
            jax.ShapeDtypeStruct((seq_len, batch, hidden), latent_seq.dtype),
            jax.ShapeDtypeStruct((batch, hidden), jnp.float32),
        ),
        grid_spec=pltpu.PrefetchScalarGridSpec(
            num_scalar_prefetch=0,
            grid=(seq_len,),
            in_specs=[
                pl.BlockSpec((1, batch, input_dim), lambda t: (t, 0, 0)),  # x_t
                pl.BlockSpec((batch, hidden), lambda t: (0, 0)),           # h0
                pl.BlockSpec((batch, hidden), lambda t: (0, 0)),           # c0
                pl.BlockSpec(w_x.shape, lambda t: (0, 0)),   # VMEM-resident W_x
                pl.BlockSpec(w_h.shape, lambda t: (0, 0)),   # VMEM-resident W_h
                pl.BlockSpec(bias.shape, lambda t: (0, 0)),  # VMEM-resident bias
            ],
            out_specs=(
                pl.BlockSpec((1, batch, hidden), lambda t: (t, 0, 0)),  # h per step
                pl.BlockSpec((batch, hidden), lambda t: (0, 0)),        # final c
            ),
            scratch_shapes=[
                pltpu.VMEM((batch, hidden), jnp.float32),   # carried h
                pltpu.VMEM((batch, hidden), jnp.float32),   # carried c
            ],
        ),
        compiler_params=pltpu.CompilerParams(
            dimension_semantics=("arbitrary",)),   # recurrence: sequential axis
    )(latent_seq, h0, c0, w_x, w_h, bias)

    return h_seq, h_seq[-1], c_final


# ---------------------------------------------------------------------------
# Init + pure-JAX reference.
# ---------------------------------------------------------------------------
def init_decoder_params(key, input_dim, hidden_dim, dtype=jnp.float32):
    """Deterministic init mirroring nn.LSTMCell: U(-1/sqrt(H), 1/sqrt(H))."""
    k1, k2, k3, k4 = jax.random.split(key, 4)
    bound = 1.0 / jnp.sqrt(jnp.asarray(hidden_dim, dtype))
    u = lambda k, shape: jax.random.uniform(k, shape, dtype, -bound, bound)
    return {
        "w_ih": u(k1, (4 * hidden_dim, input_dim)),
        "w_hh": u(k2, (4 * hidden_dim, hidden_dim)),
        "b_ih": u(k3, (4 * hidden_dim,)),
        "b_hh": u(k4, (4 * hidden_dim,)),
    }


def _reference_lstm_cell(x, h, c, params):
    gates = (x @ params["w_ih"].T + params["b_ih"]
             + h @ params["w_hh"].T + params["b_hh"])
    hd = h.shape[-1]
    i, f, g, o = (gates[:, :hd], gates[:, hd:2 * hd],
                  gates[:, 2 * hd:3 * hd], gates[:, 3 * hd:])
    c_new = jax.nn.sigmoid(f) * c + jax.nn.sigmoid(i) * jnp.tanh(g)
    h_new = jax.nn.sigmoid(o) * jnp.tanh(c_new)
    return h_new, c_new


if __name__ == "__main__":
    batch, input_dim, hidden_dim, img_channels = 2, 16, 32, 1
    seq_len = 8

    key = jax.random.PRNGKey(0)
    kx, kh, kc, kp, ks = jax.random.split(key, 5)
    latent_sample = jax.random.normal(kx, (batch, input_dim), jnp.float32)
    prev_h_dec = jax.random.normal(kh, (batch, hidden_dim), jnp.float32)
    prev_c_dec = jax.random.normal(kc, (batch, hidden_dim), jnp.float32)
    latent_seq = jax.random.normal(ks, (seq_len, batch, input_dim), jnp.float32)

    params = init_decoder_params(kp, input_dim, hidden_dim)
    prepared = prepare_decoder_params(params)      # one-time weight prep

    # ---- single-step Decoder.forward -------------------------------------
    h_new, c_new = decoder_forward(latent_sample, prev_h_dec, prev_c_dec,
                                   prepared)
    jax.block_until_ready((h_new, c_new))

    h_ref, c_ref = _reference_lstm_cell(latent_sample, prev_h_dec,
                                        prev_c_dec, params)
    assert jnp.allclose(h_new, h_ref, atol=2e-2, rtol=2e-2), "h mismatch"
    assert jnp.allclose(c_new, c_ref, atol=2e-2, rtol=2e-2), "c mismatch"

    # ---- T-step decode inside one pallas_call -----------------------------
    h_seq, h_T, c_T = decoder_decode_sequence(latent_seq, prev_h_dec,
                                              prev_c_dec, prepared)
    jax.block_until_ready((h_seq, h_T, c_T))

    h_r, c_r = prev_h_dec, prev_c_dec
    hs_ref = []
    for t in range(seq_len):
        h_r, c_r = _reference_lstm_cell(latent_seq[t], h_r, c_r, params)
        hs_ref.append(h_r)
    hs_ref = jnp.stack(hs_ref)
    assert jnp.allclose(h_seq, hs_ref, atol=5e-2, rtol=5e-2), "h_seq mismatch"
    assert jnp.allclose(h_T, h_r, atol=5e-2, rtol=5e-2), "h_T mismatch"
    assert jnp.allclose(c_T, c_r, atol=5e-2, rtol=5e-2), "c_T mismatch"

    print("KERNEL_OK")
</pallas_src>

<mosaic_0001>
module attributes {stable_mosaic.version = 11 : i64} {
  func.func @_lstm_cell_kernel(%arg0: memref<2x16xf32, #tpu.memory_space<vmem>>, %arg1: memref<2x32xf32, #tpu.memory_space<vmem>>, %arg2: memref<2x32xf32, #tpu.memory_space<vmem>>, %arg3: memref<16x512xf32, #tpu.memory_space<vmem>>, %arg4: memref<32x512xf32, #tpu.memory_space<vmem>>, %arg5: memref<1x512xf32, #tpu.memory_space<vmem>>, %arg6: memref<2x32xf32, #tpu.memory_space<vmem>>, %arg7: memref<2x32xf32, #tpu.memory_space<vmem>>) attributes {dimension_semantics = [], scalar_prefetch = 0 : i64, scratch_operands = 0 : i64, tpu.core_type = #tpu.core_type<tc>} {
    %c0 = arith.constant 0 : index
    %c0_0 = arith.constant 0 : index
    %0 = vector.load %arg0[%c0, %c0_0] : memref<2x16xf32, #tpu.memory_space<vmem>>, vector<2x16xf32>
    %c0_1 = arith.constant 0 : index
    %c0_2 = arith.constant 0 : index
    %1 = vector.load %arg1[%c0_1, %c0_2] : memref<2x32xf32, #tpu.memory_space<vmem>>, vector<2x32xf32>
    %c0_3 = arith.constant 0 : index
    %c0_4 = arith.constant 0 : index
    %2 = vector.load %arg2[%c0_3, %c0_4] : memref<2x32xf32, #tpu.memory_space<vmem>>, vector<2x32xf32>
    %c0_5 = arith.constant 0 : index
    %c0_6 = arith.constant 0 : index
    %3 = vector.load %arg3[%c0_5, %c0_6] : memref<16x512xf32, #tpu.memory_space<vmem>>, vector<16x512xf32>
    %c0_7 = arith.constant 0 : index
    %c0_8 = arith.constant 0 : index
    %4 = vector.load %arg4[%c0_7, %c0_8] : memref<32x512xf32, #tpu.memory_space<vmem>>, vector<32x512xf32>
    %c0_9 = arith.constant 0 : index
    %c0_10 = arith.constant 0 : index
    %5 = vector.load %arg5[%c0_9, %c0_10] : memref<1x512xf32, #tpu.memory_space<vmem>>, vector<1x512xf32>
    %cst = arith.constant dense<0.000000e+00> : vector<2x512xf32>
    %6 = tpu.matmul %0, %3, %cst {dimension_numbers = #tpu.dot_dimension_numbers<[1], [0], [0], [1], [0, 0, 1, 1], [], []>} : vector<2x16xf32>, vector<16x512xf32>, vector<2x512xf32> -> vector<2x512xf32>
    %cst_11 = arith.constant dense<0.000000e+00> : vector<2x512xf32>
    %7 = tpu.matmul %1, %4, %cst_11 {dimension_numbers = #tpu.dot_dimension_numbers<[1], [0], [0], [1], [0, 0, 1, 1], [], []>} : vector<2x32xf32>, vector<32x512xf32>, vector<2x512xf32> -> vector<2x512xf32>
    %8 = arith.addf %6, %7 : vector<2x512xf32>
    %9 = vector.broadcast %5 : vector<1x512xf32> to vector<2x512xf32>
    %10 = arith.addf %8, %9 : vector<2x512xf32>
    %11 = vector.extract_strided_slice %10 {offsets = [0, 0], sizes = [2, 32], strides = [1, 1]} : vector<2x512xf32> to vector<2x32xf32>
    %12 = vector.extract_strided_slice %10 {offsets = [0, 128], sizes = [2, 32], strides = [1, 1]} : vector<2x512xf32> to vector<2x32xf32>
    %13 = vector.extract_strided_slice %10 {offsets = [0, 256], sizes = [2, 32], strides = [1, 1]} : vector<2x512xf32> to vector<2x32xf32>
    %14 = vector.extract_strided_slice %10 {offsets = [0, 384], sizes = [2, 32], strides = [1, 1]} : vector<2x512xf32> to vector<2x32xf32>
    %15 = arith.negf %12 : vector<2x32xf32>
    %16 = math.exp %15 : vector<2x32xf32>
    %cst_12 = arith.constant 1.000000e+00 : f32
    %17 = vector.broadcast %cst_12 : f32 to vector<2x32xf32>
    %18 = arith.addf %17, %16 : vector<2x32xf32>
    %19 = arith.divf %17, %18 : vector<2x32xf32>
    %20 = arith.mulf %19, %2 : vector<2x32xf32>
    %21 = arith.negf %11 : vector<2x32xf32>
    %22 = math.exp %21 : vector<2x32xf32>
    %cst_13 = arith.constant 1.000000e+00 : f32
    %23 = vector.broadcast %cst_13 : f32 to vector<2x32xf32>
    %24 = arith.addf %23, %22 : vector<2x32xf32>
    %25 = arith.divf %23, %24 : vector<2x32xf32>
    %26 = math.tanh %13 : vector<2x32xf32>
    %27 = arith.mulf %25, %26 : vector<2x32xf32>
    %28 = arith.addf %20, %27 : vector<2x32xf32>
    %29 = arith.negf %14 : vector<2x32xf32>
    %30 = math.exp %29 : vector<2x32xf32>
    %cst_14 = arith.constant 1.000000e+00 : f32
    %31 = vector.broadcast %cst_14 : f32 to vector<2x32xf32>
    %32 = arith.addf %31, %30 : vector<2x32xf32>
    %33 = arith.divf %31, %32 : vector<2x32xf32>
    %34 = math.tanh %28 : vector<2x32xf32>
    %35 = arith.mulf %33, %34 : vector<2x32xf32>
    %c0_15 = arith.constant 0 : index
    %c0_16 = arith.constant 0 : index
    %36 = vector.load %arg6[%c0_15, %c0_16] : memref<2x32xf32, #tpu.memory_space<vmem>>, vector<2x32xf32>
    tpu.vector_store %arg6[%c0_15, %c0_16], %35 {strides = array<i32>} : memref<2x32xf32, #tpu.memory_space<vmem>>, vector<2x32xf32>,
    %c0_17 = arith.constant 0 : index
    %c0_18 = arith.constant 0 : index
    %37 = vector.load %arg7[%c0_17, %c0_18] : memref<2x32xf32, #tpu.memory_space<vmem>>, vector<2x32xf32>
    tpu.vector_store %arg7[%c0_17, %c0_18], %28 {strides = array<i32>} : memref<2x32xf32, #tpu.memory_space<vmem>>, vector<2x32xf32>,
    return
  }
}

</mosaic_0001>

<llo_original>
// kernel: tpu_custom_call.1
$region0: #{tpu_custom_call.1}
  #allocation0 [shape = 'u32[]', space=smem, size = 0x4, offset = 0x4, fixed_abs, tag = 'smem constant byte address 0x4 - core index']
  #allocation1 [shape = 'u32[144,128]{1,0:T(1,128)}', space=vmem, size = 0x12000, scoped, tag = 'internal scratch']
  %s0 = inlined_call_operand.hbm [shape: f32[2,16], index: 0, kind: input, shape index: {}]
  %s1 = inlined_call_operand.vmem [shape: f32[2,32], index: 1, kind: input, shape index: {}]
  %s2 = inlined_call_operand.hbm [shape: f32[2,32], index: 2, kind: input, shape index: {}]
  %s3 = inlined_call_operand.hbm [shape: f32[16,512], index: 3, kind: input, shape index: {}]
  %s4 = inlined_call_operand.hbm [shape: f32[32,512], index: 4, kind: input, shape index: {}]
  %s5 = inlined_call_operand.vmem [shape: f32[1,512], index: 5, kind: input, shape index: {}]
  %s6 = inlined_call_operand.hbm [shape: f32[2,32], index: 6, kind: output, shape index: {0}]
  %s7 = inlined_call_operand.hbm [shape: f32[2,32], index: 7, kind: output, shape index: {1}]
  %8 = xla_tuple %s6, %s7
  %s9 = sld [smem:[#allocation0]]
  $region58: #{tpu_custom_call.1} parent=0
    _
  %s11 = ssub.s32 1, %s9
  %s12 = scalar_select 0, %s11, %s9
  $region1: #{tpu_custom_call.1} parent=0
    #allocation2 [shape = 'u8[1024]{0}', space=vmem, size = 0x400, scoped, tag = 'input window, operand 0, single buffered']
    #allocation3 [shape = 's32[1]{0}', space=sflag, size = 0x4, scoped, tag = 'scoped memory for tpu_custom_call.1']
    #allocation4 [shape = 's32[1]{0}', space=sflag, size = 0x4, scoped, tag = 'scoped memory for tpu_custom_call.1']
    #allocation5 [shape = 'u8[1024]{0}', space=vmem, size = 0x400, scoped, tag = 'input window, operand 2, single buffered']
    #allocation6 [shape = 's32[1]{0}', space=sflag, size = 0x4, scoped, tag = 'scoped memory for tpu_custom_call.1']
    #allocation7 [shape = 'u8[32768]{0}', space=vmem, size = 0x8000, scoped, tag = 'input window, operand 3, single buffered']
    #allocation8 [shape = 'u8[65536]{0}', space=vmem, size = 0x10000, scoped, tag = 'input window, operand 4, single buffered']
    #allocation9 [shape = 's32[1]{0}', space=sflag, size = 0x4, scoped, tag = 'scoped memory for tpu_custom_call.1']
    #allocation10 [shape = 'u8[1024]{0}', space=vmem, size = 0x400, scoped, tag = 'output window, operand 0, single buffered']
    #allocation11 [shape = 'u8[1024]{0}', space=vmem, size = 0x400, scoped, tag = 'output window, operand 1, single buffered']
    #allocation12 [shape = 's32[1]{0}', space=sflag, size = 0x4, scoped, tag = 'scoped memory for tpu_custom_call.1']
    %13 = vsyncpa [#allocation3], 0
    %14 = vsyncpa [#allocation6], 0
    %15 = vsyncpa [#allocation9], 0
    %16 = vsyncpa [#allocation4], 0
    %17 = vsyncpa [#allocation12], 0
    // Predicated region
    $region2: #{tpu_custom_call.1} parent=1 // pred_check
      _
    $region3: #{tpu_custom_call.1} parent=1 // pred_check_branch
      %19 = sbr.rel (0) target = $region5
    $region4: #{tpu_custom_call.1} parent=1 // pred_region
      %s21 = ssub.s32 32, 32
      %22 = vsyncadd [#allocation3], %s21
      %s24 = sshll.u32 [#allocation2], 4
      %s25 = int_to_ptr.vmem [resolvable:$true] %s24
      %27 = dma.hbm_to_vmem [thread:$0]  %s0, 32, %s25, [#allocation3]
    $region5: #{tpu_custom_call.1} parent=1 // pred_fallthru
      _
    // Predicated region
    $region6: #{tpu_custom_call.1} parent=1 // pred_check
      _
    $region7: #{tpu_custom_call.1} parent=1 // pred_check_branch
      %29 = sbr.rel (0) target = $region9
    $region8: #{tpu_custom_call.1} parent=1 // pred_region
      _
    $region9: #{tpu_custom_call.1} parent=1 // pred_fallthru
      _
    // Predicated region
    $region10: #{tpu_custom_call.1} parent=1 // pred_check
      _
    $region11: #{tpu_custom_call.1} parent=1 // pred_check_branch
      %31 = sbr.rel (0) target = $region13
    $region12: #{tpu_custom_call.1} parent=1 // pred_region
      %s33 = ssub.s32 32, 32
      %34 = vsyncadd [#allocation6], %s33
      %s36 = sshll.u32 [#allocation5], 4
      %s37 = int_to_ptr.vmem [resolvable:$true] %s36
      %39 = dma.hbm_to_vmem [thread:$0]  %s2, 32, %s37, [#allocation6]
    $region13: #{tpu_custom_call.1} parent=1 // pred_fallthru
      _
    // Predicated region
    $region14: #{tpu_custom_call.1} parent=1 // pred_check
      _
    $region15: #{tpu_custom_call.1} parent=1 // pred_check_branch
      %41 = sbr.rel (0) target = $region17
    $region16: #{tpu_custom_call.1} parent=1 // pred_region
      %s43 = ssub.s32 1024, 1024
      %44 = vsyncadd [#allocation6], %s43
      %s45 = sshll.u32 [#allocation7], 4
      %s46 = int_to_ptr.vmem [resolvable:$true] %s45
      %51 = dma.hbm_to_vmem [thread:$0]  %s3, 1024, %s46, [#allocation6], 512, 512, 32
    $region17: #{tpu_custom_call.1} parent=1 // pred_fallthru
      _
    // Predicated region
    $region18: #{tpu_custom_call.1} parent=1 // pred_check
      _
    $region19: #{tpu_custom_call.1} parent=1 // pred_check_branch
      %53 = sbr.rel (0) target = $region21
    $region20: #{tpu_custom_call.1} parent=1 // pred_region
      %s55 = ssub.s32 2048, 2048
      %56 = vsyncadd [#allocation9], %s55
      %s57 = sshll.u32 [#allocation8], 4
      %s58 = int_to_ptr.vmem [resolvable:$true] %s57
      %63 = dma.hbm_to_vmem [thread:$0]  %s4, 2048, %s58, [#allocation9], 512, 512, 32
    $region21: #{tpu_custom_call.1} parent=1 // pred_fallthru
      _
    // Predicated region
    $region22: #{tpu_custom_call.1} parent=1 // pred_check
      _
    $region23: #{tpu_custom_call.1} parent=1 // pred_check_branch
      %65 = sbr.rel (0) target = $region25
    $region24: #{tpu_custom_call.1} parent=1 // pred_region
      _
    $region25: #{tpu_custom_call.1} parent=1 // pred_fallthru
      _
    // Predicated region
    $region26: #{tpu_custom_call.1} parent=1 // pred_check
      _
    $region27: #{tpu_custom_call.1} parent=1 // pred_check_branch
      %67 = sbr.rel (0) target = $region29
    $region28: #{tpu_custom_call.1} parent=1 // pred_region
      %68 = dma.done [#allocation3], 32
    $region29: #{tpu_custom_call.1} parent=1 // pred_fallthru
      _
    // Predicated region
    $region30: #{tpu_custom_call.1} parent=1 // pred_check
      _
    $region31: #{tpu_custom_call.1} parent=1 // pred_check_branch
      %70 = sbr.rel (0) target = $region33
    $region32: #{tpu_custom_call.1} parent=1 // pred_region
      %71 = dma.done [#allocation6], 32
    $region33: #{tpu_custom_call.1} parent=1 // pred_fallthru
      _
    // Predicated region
    $region34: #{tpu_custom_call.1} parent=1 // pred_check
      _
    $region35: #{tpu_custom_call.1} parent=1 // pred_check_branch
      %73 = sbr.rel (0) target = $region37
    $region36: #{tpu_custom_call.1} parent=1 // pred_region
      %74 = dma.done [#allocation6], 1024
    $region37: #{tpu_custom_call.1} parent=1 // pred_fallthru
      _
    // Predicated region
    $region38: #{tpu_custom_call.1} parent=1 // pred_check
      _
    $region39: #{tpu_custom_call.1} parent=1 // pred_check_branch
      %76 = sbr.rel (0) target = $region41
    $region40: #{tpu_custom_call.1} parent=1 // pred_region
      %77 = dma.done [#allocation9], 2048
    $region41: #{tpu_custom_call.1} parent=1 // pred_fallthru
      _
    %v78 = vld [vmem:[#allocation2] sm:$0x3]
    %v79 = vld [vmem:[%s1] sm:$0x3]
    %v80 = vld [vmem:[#allocation5] sm:$0x3]
    %v81 = vld [vmem:[#allocation7] sm:$0xff]
    %v82 = vld [vmem:[#allocation7 + $0x8] sm:$0xff]
    %v83 = vld [vmem:[#allocation7 + $0x10] sm:$0xff]
    %v84 = vld [vmem:[#allocation7 + $0x18] sm:$0xff]
    %v85 = vld [vmem:[#allocation7 + $0x20] sm:$0xff]
    %v86 = vld [vmem:[#allocation7 + $0x28] sm:$0xff]
    %v87 = vld [vmem:[#allocation7 + $0x30] sm:$0xff]
    %v88 = vld [vmem:[#allocation7 + $0x38] sm:$0xff]
    %v89 = vld [vmem:[#allocation8] sm:$0xff]
    %v90 = vld [vmem:[#allocation8 + $0x8] sm:$0xff]
    %v91 = vld [vmem:[#allocation8 + $0x10] sm:$0xff]
    %v92 = vld [vmem:[#allocation8 + $0x18] sm:$0xff]
    %v93 = vld [vmem:[#allocation8 + $0x20] sm:$0xff]
    %v94 = vld [vmem:[#allocation8 + $0x28] sm:$0xff]
    %v95 = vld [vmem:[#allocation8 + $0x30] sm:$0xff]
    %v96 = vld [vmem:[#allocation8 + $0x38] sm:$0xff]
    %v97 = vld [vmem:[#allocation8 + $0x40] sm:$0xff]
    %v98 = vld [vmem:[#allocation8 + $0x48] sm:$0xff]
    %v99 = vld [vmem:[#allocation8 + $0x50] sm:$0xff]
    %v100 = vld [vmem:[#allocation8 + $0x58] sm:$0xff]
    %v101 = vld [vmem:[#allocation8 + $0x60] sm:$0xff]
    %v102 = vld [vmem:[#allocation8 + $0x68] sm:$0xff]
    %v103 = vld [vmem:[#allocation8 + $0x70] sm:$0xff]
    %v104 = vld [vmem:[#allocation8 + $0x78] sm:$0xff]
    %v105 = vld [vmem:[%s5] sm:$0xf]
    %vm106 = vcmask 261120
    %v108 = vsel %vm106, %v79, 0
    %110 = vmatprep.subr.mxu0 %v90
    %111 = vmatpush1.msra.mxu0 %v89
    %112 = vmatprep.subr.mxu0 %v94
    %113 = vmatpush1.msra.mxu0 %v93
    %114 = vmatprep.subr.mxu0 %v98
    %115 = vmatpush1.msra.mxu0 %v97
    %116 = vmatprep.subr.mxu0 %v102
    %117 = vmatpush1.msra.mxu0 %v101
    %118 = vmatprep.subr.mxu0 0.0
    %119 = vmatpush1.msra.mxu0 0.0
    %120 = vmatprep.subr.mxu0 0.0
    %121 = vmatpush1.msra.mxu0 0.0
    %122 = vmatprep.subr.mxu0 0.0
    %123 = vmatpush1.msra.mxu0 0.0
    %124 = vmatprep.subr.mxu0 0.0
    %125 = vmatpush1.msra.mxu0 0.0
    %126 = vmatprep.subr.mxu0 0.0
    %127 = vmatpush1.msra.mxu0 0.0
    %128 = vmatprep.subr.mxu0 0.0
    %129 = vmatpush1.msra.mxu0 0.0
    %130 = vmatprep.subr.mxu0 0.0
    %131 = vmatpush1.msra.mxu0 0.0
    %132 = vmatprep.subr.mxu0 0.0
    %133 = vmatpush1.msra.mxu0 0.0
    %134 = vmatprep.subr.mxu0 0.0
    %135 = vmatpush1.msra.mxu0 0.0
    %136 = vmatprep.subr.mxu0 0.0
    %137 = vmatpush1.msra.mxu0 0.0
    %138 = vmatprep.subr.mxu0 0.0
    %139 = vmatpush1.msra.mxu0 0.0
    %140 = vmatprep.subr.mxu0 0.0
    %141 = vmatpush1.msra.mxu0 0.0
    %142 = vmatprep.subr.mxu0 0.0
    %143 = vmatpush1.msra.mxu0 0.0
    %144 = vmatprep.subr.mxu0 0.0
    %145 = vmatpush1.msra.mxu0 0.0
    %146 = vmatprep.subr.mxu0 0.0
    %147 = vmatpush1.msra.mxu0 0.0
    %148 = vmatprep.subr.mxu0 0.0
    %149 = vmatpush1.msra.mxu0 0.0
    %150 = vmatprep.subr.mxu0 0.0
    %151 = vmatpush1.msra.mxu0 0.0
    %152 = vmatprep.subr.mxu0 0.0
    %153 = vmatpush1.msra.mxu0 0.0
    %154 = vmatprep.subr.mxu0 0.0
    %155 = vmatpush1.msra.mxu0 0.0
    %156 = vmatprep.subr.mxu0 0.0
    %157 = vmatpush1.msra.mxu0 0.0
    %158 = vmatprep.subr.mxu0 0.0
    %159 = vmatpush1.msra.mxu0 0.0
    %160 = vmatprep.subr.mxu0 0.0
    %161 = vmatpush1.msra.mxu0 0.0
    %162 = vmatprep.subr.mxu0 0.0
    %163 = vmatpush1.msra.mxu0 0.0
    %164 = vmatprep.subr.mxu0 0.0
    %165 = vmatpush1.msra.mxu0 0.0
    %166 = vmatprep.subr.mxu0 0.0
    %167 = vmatpush1.msra.mxu0 0.0
    %168 = vmatprep.subr.mxu0 0.0
    %169 = vmatpush1.msra.mxu0 0.0
    %170 = vmatprep.subr.mxu0 0.0
    %171 = vmatpush1.msra.mxu0 0.0
    %172 = vmatprep.subr.mxu0 0.0
    %173 = vmatpush1.msra.mxu0 0.0
    %174 = vmatprep.mubr.f32.mxu0 0.0
    %175 = vmatmul.mubr.f32.gmra.mrb[0].mxu0 %v108
    %v176 = vpop.f32.mrb[0].mxu0
    %v177 = vadd.f32 0.0, %v176
    %v178 = vpop.f32.mrb[0].mxu0
    %v179 = vadd.f32 0.0, %v178
    %180 = vdwg.mxu0
    %181 = vmatprep.subr.mxu0 %v92
    %182 = vmatpush1.msra.mxu0 %v91
    %183 = vmatprep.subr.mxu0 %v96
    %184 = vmatpush1.msra.mxu0 %v95
    %185 = vmatprep.subr.mxu0 %v100
    %186 = vmatpush1.msra.mxu0 %v99
    %187 = vmatprep.subr.mxu0 %v104
    %188 = vmatpush1.msra.mxu0 %v103
    %189 = vmatprep.subr.mxu0 0.0
    %190 = vmatpush1.msra.mxu0 0.0
    %191 = vmatprep.subr.mxu0 0.0
    %192 = vmatpush1.msra.mxu0 0.0
    %193 = vmatprep.subr.mxu0 0.0
    %194 = vmatpush1.msra.mxu0 0.0
    %195 = vmatprep.subr.mxu0 0.0
    %196 = vmatpush1.msra.mxu0 0.0
    %197 = vmatprep.subr.mxu0 0.0
    %198 = vmatpush1.msra.mxu0 0.0
    %199 = vmatprep.subr.mxu0 0.0
    %200 = vmatpush1.msra.mxu0 0.0
    %201 = vmatprep.subr.mxu0 0.0
    %202 = vmatpush1.msra.mxu0 0.0
    %203 = vmatprep.subr.mxu0 0.0
    %204 = vmatpush1.msra.mxu0 0.0
    %205 = vmatprep.subr.mxu0 0.0
    %206 = vmatpush1.msra.mxu0 0.0
    %207 = vmatprep.subr.mxu0 0.0
    %208 = vmatpush1.msra.mxu0 0.0
    %209 = vmatprep.subr.mxu0 0.0
    %210 = vmatpush1.msra.mxu0 0.0
    %211 = vmatprep.subr.mxu0 0.0
    %212 = vmatpush1.msra.mxu0 0.0
    %213 = vmatprep.subr.mxu0 0.0
    %214 = vmatpush1.msra.mxu0 0.0
    %215 = vmatprep.subr.mxu0 0.0
    %216 = vmatpush1.msra.mxu0 0.0
    %217 = vmatprep.subr.mxu0 0.0
    %218 = vmatpush1.msra.mxu0 0.0
    %219 = vmatprep.subr.mxu0 0.0
    %220 = vmatpush1.msra.mxu0 0.0
    %221 = vmatprep.subr.mxu0 0.0
    %222 = vmatpush1.msra.mxu0 0.0
    %223 = vmatprep.subr.mxu0 0.0
    %224 = vmatpush1.msra.mxu0 0.0
    %225 = vmatprep.subr.mxu0 0.0
    %226 = vmatpush1.msra.mxu0 0.0
    %227 = vmatprep.subr.mxu0 0.0
    %228 = vmatpush1.msra.mxu0 0.0
    %229 = vmatprep.subr.mxu0 0.0
    %230 = vmatpush1.msra.mxu0 0.0
    %231 = vmatprep.subr.mxu0 0.0
    %232 = vmatpush1.msra.mxu0 0.0
    %233 = vmatprep.subr.mxu0 0.0
    %234 = vmatpush1.msra.mxu0 0.0
    %235 = vmatprep.subr.mxu0 0.0
    %236 = vmatpush1.msra.mxu0 0.0
    %237 = vmatprep.subr.mxu0 0.0
    %238 = vmatpush1.msra.mxu0 0.0
    %239 = vmatprep.subr.mxu0 0.0
    %240 = vmatpush1.msra.mxu0 0.0
    %241 = vmatprep.subr.mxu0 0.0
    %242 = vmatpush1.msra.mxu0 0.0
    %243 = vmatprep.subr.mxu0 0.0
    %244 = vmatpush1.msra.mxu0 0.0
    %245 = vmatprep.mubr.f32.mxu0 0.0
    %246 = vmatmul.mubr.f32.gmra.mrb[0].mxu0 %v108
    %v247 = vpop.f32.mrb[0].mxu0
    %v248 = vadd.f32 0.0, %v247
    %v249 = vpop.f32.mrb[0].mxu0
    %v250 = vadd.f32 0.0, %v249
    %251 = vdwg.mxu0
    %vm252 = vcmask 130048
    %v254 = vsel %vm252, %v78, 0
    %256 = vmatprep.subr.mxu0 %v82
    %257 = vmatpush1.msra.mxu0 %v81
    %258 = vmatprep.subr.mxu0 %v86
    %259 = vmatpush1.msra.mxu0 %v85
    %260 = vmatprep.subr.mxu0 0.0
    %261 = vmatpush1.msra.mxu0 0.0
    %262 = vmatprep.subr.mxu0 0.0
    %263 = vmatpush1.msra.mxu0 0.0
    %264 = vmatprep.subr.mxu0 0.0
    %265 = vmatpush1.msra.mxu0 0.0
    %266 = vmatprep.subr.mxu0 0.0
    %267 = vmatpush1.msra.mxu0 0.0
    %268 = vmatprep.subr.mxu0 0.0
    %269 = vmatpush1.msra.mxu0 0.0
    %270 = vmatprep.subr.mxu0 0.0
    %271 = vmatpush1.msra.mxu0 0.0
    %272 = vmatprep.subr.mxu0 0.0
    %273 = vmatpush1.msra.mxu0 0.0
    %274 = vmatprep.subr.mxu0 0.0
    %275 = vmatpush1.msra.mxu0 0.0
    %276 = vmatprep.subr.mxu0 0.0
    %277 = vmatpush1.msra.mxu0 0.0
    %278 = vmatprep.subr.mxu0 0.0
    %279 = vmatpush1.msra.mxu0 0.0
    %280 = vmatprep.subr.mxu0 0.0
    %281 = vmatpush1.msra.mxu0 0.0
    %282 = vmatprep.subr.mxu0 0.0
    %283 = vmatpush1.msra.mxu0 0.0
    %284 = vmatprep.subr.mxu0 0.0
    %285 = vmatpush1.msra.mxu0 0.0
    %286 = vmatprep.subr.mxu0 0.0
    %287 = vmatpush1.msra.mxu0 0.0
    %288 = vmatprep.subr.mxu0 0.0
    %289 = vmatpush1.msra.mxu0 0.0
    %290 = vmatprep.subr.mxu0 0.0
    %291 = vmatpush1.msra.mxu0 0.0
    %292 = vmatprep.subr.mxu0 0.0
    %293 = vmatpush1.msra.mxu0 0.0
    %294 = vmatprep.subr.mxu0 0.0
    %295 = vmatpush1.msra.mxu0 0.0
    %296 = vmatprep.subr.mxu0 0.0
    %297 = vmatpush1.msra.mxu0 0.0
    %298 = vmatprep.subr.mxu0 0.0
    %299 = vmatpush1.msra.mxu0 0.0
    %300 = vmatprep.subr.mxu0 0.0
    %301 = vmatpush1.msra.mxu0 0.0
    %302 = vmatprep.subr.mxu0 0.0
    %303 = vmatpush1.msra.mxu0 0.0
    %304 = vmatprep.subr.mxu0 0.0
    %305 = vmatpush1.msra.mxu0 0.0
    %306 = vmatprep.subr.mxu0 0.0
    %307 = vmatpush1.msra.mxu0 0.0
    %308 = vmatprep.subr.mxu0 0.0
    %309 = vmatpush1.msra.mxu0 0.0
    %310 = vmatprep.subr.mxu0 0.0
    %311 = vmatpush1.msra.mxu0 0.0
    %312 = vmatprep.subr.mxu0 0.0
    %313 = vmatpush1.msra.mxu0 0.0
    %314 = vmatprep.subr.mxu0 0.0
    %315 = vmatpush1.msra.mxu0 0.0
    %316 = vmatprep.subr.mxu0 0.0
    %317 = vmatpush1.msra.mxu0 0.0
    %318 = vmatprep.subr.mxu0 0.0
    %319 = vmatpush1.msra.mxu0 0.0
    %320 = vmatprep.mubr.f32.mxu0 0.0
    %321 = vmatmul.mubr.f32.gmra.mrb[0].mxu0 %v254
    %v322 = vpop.f32.mrb[0].mxu0
    %v323 = vadd.f32 %v177, %v322
    %v324 = vpop.f32.mrb[0].mxu0
    %v325 = vadd.f32 %v179, %v324
    %326 = vdwg.mxu0
    %327 = vmatprep.subr.mxu0 %v84
    %328 = vmatpush1.msra.mxu0 %v83
    %329 = vmatprep.subr.mxu0 %v88
    %330 = vmatpush1.msra.mxu0 %v87
    %331 = vmatprep.subr.mxu0 0.0
    %332 = vmatpush1.msra.mxu0 0.0
    %333 = vmatprep.subr.mxu0 0.0
    %334 = vmatpush1.msra.mxu0 0.0
    %335 = vmatprep.subr.mxu0 0.0
    %336 = vmatpush1.msra.mxu0 0.0
    %337 = vmatprep.subr.mxu0 0.0
    %338 = vmatpush1.msra.mxu0 0.0
    %339 = vmatprep.subr.mxu0 0.0
    %340 = vmatpush1.msra.mxu0 0.0
    %341 = vmatprep.subr.mxu0 0.0
    %342 = vmatpush1.msra.mxu0 0.0
    %343 = vmatprep.subr.mxu0 0.0
    %344 = vmatpush1.msra.mxu0 0.0
    %345 = vmatprep.subr.mxu0 0.0
    %346 = vmatpush1.msra.mxu0 0.0
    %347 = vmatprep.subr.mxu0 0.0
    %348 = vmatpush1.msra.mxu0 0.0
    %349 = vmatprep.subr.mxu0 0.0
    %350 = vmatpush1.msra.mxu0 0.0
    %351 = vmatprep.subr.mxu0 0.0
    %352 = vmatpush1.msra.mxu0 0.0
    %353 = vmatprep.subr.mxu0 0.0
    %354 = vmatpush1.msra.mxu0 0.0
    %355 = vmatprep.subr.mxu0 0.0
    %356 = vmatpush1.msra.mxu0 0.0
    %357 = vmatprep.subr.mxu0 0.0
    %358 = vmatpush1.msra.mxu0 0.0
    %359 = vmatprep.subr.mxu0 0.0
    %360 = vmatpush1.msra.mxu0 0.0
    %361 = vmatprep.subr.mxu0 0.0
    %362 = vmatpush1.msra.mxu0 0.0
    %363 = vmatprep.subr.mxu0 0.0
    %364 = vmatpush1.msra.mxu0 0.0
    %365 = vmatprep.subr.mxu0 0.0
    %366 = vmatpush1.msra.mxu0 0.0
    %367 = vmatprep.subr.mxu0 0.0
    %368 = vmatpush1.msra.mxu0 0.0
    %369 = vmatprep.subr.mxu0 0.0
    %370 = vmatpush1.msra.mxu0 0.0
    %371 = vmatprep.subr.mxu0 0.0
    %372 = vmatpush1.msra.mxu0 0.0
    %373 = vmatprep.subr.mxu0 0.0
    %374 = vmatpush1.msra.mxu0 0.0
    %375 = vmatprep.subr.mxu0 0.0
    %376 = vmatpush1.msra.mxu0 0.0
    %377 = vmatprep.subr.mxu0 0.0
    %378 = vmatpush1.msra.mxu0 0.0
    %379 = vmatprep.subr.mxu0 0.0
    %380 = vmatpush1.msra.mxu0 0.0
    %381 = vmatprep.subr.mxu0 0.0
    %382 = vmatpush1.msra.mxu0 0.0
    %383 = vmatprep.subr.mxu0 0.0
    %384 = vmatpush1.msra.mxu0 0.0
    %385 = vmatprep.subr.mxu0 0.0
    %386 = vmatpush1.msra.mxu0 0.0
    %387 = vmatprep.subr.mxu0 0.0
    %388 = vmatpush1.msra.mxu0 0.0
    %389 = vmatprep.subr.mxu0 0.0
    %390 = vmatpush1.msra.mxu0 0.0
    %391 = vmatprep.mubr.f32.mxu0 0.0
    %392 = vmatmul.mubr.f32.gmra.mrb[0].mxu0 %v254
    %v393 = vpop.f32.mrb[0].mxu0
    %v394 = vadd.f32 %v248, %v393
    %v395 = vpop.f32.mrb[0].mxu0
    %v396 = vadd.f32 %v250, %v395
    %397 = vdwg.mxu0
    %v399 = vlaneseq
    %v400 = vshrl.u32 %v399, 7
    %v401 = vsub.s32 0, %v400
    %v402 = vrot.slane %v105, %v401
    %v403 = vlaneseq
    %v404 = vshrl.u32 %v403, 7
    %v405 = vsub.s32 1, %v404
    %v406 = vrot.slane %v105, %v405
    %v407 = vlaneseq
    %v408 = vshrl.u32 %v407, 7
    %v409 = vsub.s32 2, %v408
    %v410 = vrot.slane %v105, %v409
    %v411 = vlaneseq
    %v412 = vshrl.u32 %v411, 7
    %v413 = vsub.s32 3, %v412
    %v414 = vrot.slane %v105, %v413
    %v419 = vadd.f32 %v323, %v402
    %v420 = vadd.f32 %v325, %v406
    %v421 = vadd.f32 %v394, %v410
    %v422 = vadd.f32 %v396, %v414
    %v423 = vxor.u32 %v420, 2147483648
    %v424 = vmul.f32 %v423, 1.442695
    %v425 = vpow.pop %v424
    %v426 = vadd.f32 %v425, 1.0
    %v427 = vrcp.pop %v426
    %v428 = vmul.f32 1.0, %v427
    %v429 = vmul.f32 %v428, %v80
    %v430 = vxor.u32 %v419, 2147483648
    %v431 = vmul.f32 %v430, 1.442695
    %v432 = vpow.pop %v431
    %v433 = vadd.f32 %v432, 1.0
    %v434 = vrcp.pop %v433
    %v435 = vmul.f32 1.0, %v434
    %v436 = vtanh.pop %v421
    %v437 = vmul.f32 %v435, %v436
    %v438 = vadd.f32 %v429, %v437
    %v439 = vxor.u32 %v422, 2147483648
    %v440 = vmul.f32 %v439, 1.442695
    %v441 = vpow.pop %v440
    %v442 = vadd.f32 %v441, 1.0
    %v443 = vrcp.pop %v442
    %v444 = vmul.f32 1.0, %v443
    %v445 = vtanh.pop %v438
    %v446 = vmul.f32 %v444, %v445
    %vm447 = vcmask 254976
    %448 = vst.msk [vmem:[#allocation10] sm:$0x3] %vm447, %v446
    %449 = vst.msk [vmem:[#allocation11] sm:$0x3] %vm447, %v438
    // Predicated region
    $region42: #{tpu_custom_call.1} parent=1 // pred_check
      _
    $region43: #{tpu_custom_call.1} parent=1 // pred_check_branch
      %451 = sbr.rel (0) target = $region45
    $region44: #{tpu_custom_call.1} parent=1 // pred_region
      %s453 = ssub.s32 32, 32
      %454 = vsyncadd [#allocation4], %s453
      %s456 = sshll.u32 [#allocation10], 4
      %s457 = int_to_ptr.vmem [resolvable:$true] %s456
      %459 = dma.vmem_to_hbm [thread:$0]  %s457, 32, %s6, [#allocation4]
    $region45: #{tpu_custom_call.1} parent=1 // pred_fallthru
      _
    // Predicated region
    $region46: #{tpu_custom_call.1} parent=1 // pred_check
      _
    $region47: #{tpu_custom_call.1} parent=1 // pred_check_branch
      %461 = sbr.rel (0) target = $region49
    $region48: #{tpu_custom_call.1} parent=1 // pred_region
      %s463 = ssub.s32 32, 32
      %464 = vsyncadd [#allocation12], %s463
      %s466 = sshll.u32 [#allocation11], 4
      %s467 = int_to_ptr.vmem [resolvable:$true] %s466
      %469 = dma.vmem_to_hbm [thread:$0]  %s467, 32, %s7, [#allocation12]
    $region49: #{tpu_custom_call.1} parent=1 // pred_fallthru
      _
    // Predicated region
    $region50: #{tpu_custom_call.1} parent=1 // pred_check
      _
    $region51: #{tpu_custom_call.1} parent=1 // pred_check_branch
      %471 = sbr.rel (0) target = $region53
    $region52: #{tpu_custom_call.1} parent=1 // pred_region
      %472 = dma.done [#allocation4], 32
    $region53: #{tpu_custom_call.1} parent=1 // pred_fallthru
      _
    // Predicated region
    $region54: #{tpu_custom_call.1} parent=1 // pred_check
      _
    $region55: #{tpu_custom_call.1} parent=1 // pred_check_branch
      %474 = sbr.rel (0) target = $region57
    $region56: #{tpu_custom_call.1} parent=1 // pred_region
      %475 = dma.done [#allocation12], 32
    $region57: #{tpu_custom_call.1} parent=1 // pred_fallthru
      _
    %476 = vsyncpa [#allocation3], 1
    %477 = vsyncpa [#allocation6], 1
    %478 = vsyncpa [#allocation9], 1
    %479 = vsyncpa [#allocation4], 1
    %480 = vsyncpa [#allocation12], 1

</llo_original>
